<compile_context>
chip_gen: v6e
topology: v6e:2x2x1
jax: 0.10.0
libtpu: 0.0.40
codegen_flags: <defaults>
</compile_context>

<pallas_src>
import numpy as np
import jax
import jax.numpy as jnp
from jax import lax
from jax.experimental import pallas as pl
from jax.experimental.pallas import tpu as pltpu


RECORD_STEPS = (800, 600, 400, 100, 50, 10, 0)


# ----------------------------- Pallas kernel --------------------------------
def ddpm_sample_kernel(a_ref, c_ref, s_ref, recf_ref, recs_ref,   # SMEM 1-D tables
                       x0_ref, tbias_ref, noise_ref,              # VMEM tensors
                       w1_ref, w2_ref, b2_ref,                    # VMEM weights
                       x_rec_ref):                                # out: (K_rec, B, D)
    T = a_ref.shape[0]

    # loop-invariant weight loads (hoisted once, stay VMEM/vreg resident)
    w1 = w1_ref[...]            # (D, H) f32
    w2 = w2_ref[...]            # (H, D) f32
    b2 = b2_ref[...]            # (1, D) f32

    def step(i, x):             # iteration i <-> diffusion step t = T-1-i
        a = a_ref[i]            # sqrt(1 / alpha_t)
        c = c_ref[i]            # coeff_t
        s = s_ref[i]            # sigma_t (pre-zeroed at t == 0 so the z term vanishes)

        # synthetic eps-model: h = tanh(x @ W1 + temb @ Wt + b1); eps = h @ W2 + b2
        # (the time-embedding branch temb @ Wt + b1 is precomputed -> tbias_ref[i])
        h = jnp.tanh(
            jnp.dot(x, w1, preferred_element_type=jnp.float32) + tbias_ref[i])
        eps = jnp.dot(h, w2, preferred_element_type=jnp.float32) + b2

        # reverse-diffusion update: x_{t-1} = a*x - c*eps + s*z
        x_new = a * x - c * eps + s * noise_ref[i]

        # write a clipped snapshot only on recorded steps
        @pl.when(recf_ref[i] == 1)
        def _record():
            x_rec_ref[recs_ref[i]] = jnp.clip(x_new, -1.0, 1.0)

        return x_new

    lax.fori_loop(0, T, step, x0_ref[...])


def _build_sampler_call(T, K_rec, B_pad, D, H):
    f32 = 4
    footprint = f32 * (
        B_pad * D               # x0
        + T * H                 # tbias
        + T * B_pad * D         # noise table
        + 2 * D * H             # w1 + w2
        + D                     # b2
        + K_rec * B_pad * D     # recorded output
        + 2 * B_pad * D         # loop state + temporaries
    )
    vmem_limit = int(min(max(2 * footprint, 8 << 20), 96 << 20))

    smem = pl.BlockSpec(memory_space=pltpu.MemorySpace.SMEM)
    vmem = pl.BlockSpec(memory_space=pltpu.MemorySpace.VMEM)

    call = pl.pallas_call(
        ddpm_sample_kernel,
        out_shape=jax.ShapeDtypeStruct((K_rec, B_pad, D), jnp.float32),
        in_specs=[smem, smem, smem, smem, smem,      # a, c, s, rec_flag, rec_slot
                  vmem, vmem, vmem,                  # x0, tbias, noise
                  vmem, vmem, vmem],                 # w1, w2, b2
        out_specs=vmem,
        compiler_params=pltpu.CompilerParams(vmem_limit_bytes=vmem_limit),
    )
    return jax.jit(call)


# ------------------------------- glue / setup -------------------------------
def timestep_embedding_table(T, dim):
    """Sinusoidal embeddings for t = 0..T-1, shape (T, dim)."""
    half = dim // 2
    freqs = np.exp(-np.log(10000.0) * np.arange(half, dtype=np.float32) / half)
    args = np.arange(T, dtype=np.float32)[:, None] * freqs[None, :]
    return np.concatenate([np.sin(args), np.cos(args)], axis=1).astype(np.float32)


class DDPMSample:
    """JAX/Pallas port of the PyTorch DDPMSample module (single-kernel sampler)."""

    def __init__(self, model_params, T, beta=(1e-4, 0.02)):
        p = model_params
        self.T = T
        self.E = p["wt"].shape[0]
        self.H = p["w1"].shape[1]
        self.D_model = p["w1"].shape[0]

        # DDPM schedule (matches the PyTorch register_buffers)
        beta_t = np.linspace(beta[0], beta[1], T, dtype=np.float32)
        alpha_t = 1.0 - beta_t
        alpha_t_bar = np.cumprod(alpha_t)
        one_alpha_t = np.sqrt(1.0 / alpha_t)
        coeff = one_alpha_t * (1.0 - alpha_t) / np.sqrt(1.0 - alpha_t_bar)
        sigma_t = np.sqrt(beta_t)

        # iteration i handles diffusion step t = T-1-i (descending t)
        ts = np.arange(T - 1, -1, -1)
        self.a_tab = jnp.asarray(one_alpha_t[ts].astype(np.float32))          # (T,)
        self.c_tab = jnp.asarray(coeff[ts].astype(np.float32))                # (T,)
        self.s_tab = jnp.asarray(                                             # (T,)
            np.where(ts > 0, sigma_t[ts], 0.0).astype(np.float32))            # z == 0 at t == 0

        # record flags / output slots, 1-D int32 tables in iteration order
        record = set(RECORD_STEPS)
        recf = np.zeros((T,), dtype=np.int32)
        recs = np.zeros((T,), dtype=np.int32)
        slot = 0
        for i, t in enumerate(ts):
            if int(t) in record:
                recf[i] = 1
                recs[i] = slot
                slot += 1
        self.recf = jnp.asarray(recf)
        self.recs = jnp.asarray(recs)
        self.K_rec = slot

        # fold the time-embedding branch into a per-step bias: emb(t) @ wt + b1
        temb = jnp.asarray(timestep_embedding_table(T, self.E))               # (T, E)
        tbias = temb @ p["wt"].astype(jnp.float32) + p["b1"].astype(jnp.float32)
        self.tbias = tbias[jnp.asarray(ts)].reshape(T, 1, self.H).astype(jnp.float32)

        # f32 weights (avoid bf16 feedback drift; footprint is tiny at these shapes)
        self.w1 = p["w1"].astype(jnp.float32)
        self.w2 = p["w2"].astype(jnp.float32)
        self.b2 = p["b2"].astype(jnp.float32).reshape(1, self.D_model)

        self._call_cache = {}

    def _get_call(self, B_pad, D):
        key = (B_pad, D)
        if key not in self._call_cache:
            self._call_cache[key] = _build_sampler_call(
                self.T, self.K_rec, B_pad, D, self.H)
        return self._call_cache[key]

    def forward(self, x_t, key):
        B, C, Hi, Wi = x_t.shape
        D = C * Hi * Wi
        assert D == self.D_model

        # pad batch to a multiple of 8 (f32 sublane tile) for MXU / vreg utilization
        B_pad = max(8, ((B + 7) // 8) * 8)
        x_flat = x_t.reshape(B, D).astype(jnp.float32)
        x0 = jnp.zeros((B_pad, D), jnp.float32).at[:B].set(x_flat)

        # TODO(synk): generate noise in-kernel with the TPU HW PRNG on real TPUs.
        noise = jax.random.normal(key, (self.T, B_pad, D), dtype=jnp.float32)

        call = self._get_call(B_pad, D)
        x_rec = call(self.a_tab, self.c_tab, self.s_tab, self.recf, self.recs,
                     x0, self.tbias, noise,
                     self.w1, self.w2, self.b2)                # (K_rec, B_pad, D)

        snaps = jnp.transpose(x_rec[:, :B, :], (1, 0, 2))      # (B, K_rec, D)
        out = jnp.concatenate([x_flat[:, None, :], snaps], axis=1)
        return out.reshape(B, 1 + self.K_rec, C, Hi, Wi)       # (B, K, C, H, W)


if __name__ == "__main__":
    # small shapes: batch=2, channels=4, spatial=16 -> D=1024; hidden=128; temb=32
    B, C, Himg, Wimg = 2, 4, 16, 16
    D = C * Himg * Wimg
    E, H = 32, 128
    T = 16   # small T; record steps {10, 0} fall inside range(T)

    key = jax.random.PRNGKey(0)
    k_x, k_w1, k_wt, k_w2, k_noise = jax.random.split(key, 5)

    params = {
        "w1": 0.02 * jax.random.normal(k_w1, (D, H), dtype=jnp.float32),
        "wt": 0.02 * jax.random.normal(k_wt, (E, H), dtype=jnp.float32),
        "b1": jnp.zeros((1, H), dtype=jnp.float32),
        "w2": 0.02 * jax.random.normal(k_w2, (H, D), dtype=jnp.float32),
        "b2": jnp.zeros((1, D), dtype=jnp.float32),
    }

    sampler = DDPMSample(params, T)
    x_t = jax.random.normal(k_x, (B, C, Himg, Wimg), dtype=jnp.float32)

    out = sampler.forward(x_t, k_noise)
    out = jax.block_until_ready(out)

    # x list = [x_t] + clipped snapshots at t in {10, 0}  ->  K = 3
    assert out.shape == (B, 3, C, Himg, Wimg), out.shape
    assert out.dtype == jnp.float32
    assert bool(jnp.all(jnp.isfinite(out)))
    print("KERNEL_OK")
</pallas_src>

<mosaic_0001>
module attributes {stable_mosaic.version = 11 : i64} {
  func.func @ddpm_sample_kernel(%arg0: memref<16xf32, #tpu.memory_space<smem>>, %arg1: memref<16xf32, #tpu.memory_space<smem>>, %arg2: memref<16xf32, #tpu.memory_space<smem>>, %arg3: memref<16xi32, #tpu.memory_space<smem>>, %arg4: memref<16xi32, #tpu.memory_space<smem>>, %arg5: memref<8x1024xf32, #tpu.memory_space<vmem>>, %arg6: memref<16x1x128xf32, #tpu.memory_space<vmem>>, %arg7: memref<16x8x1024xf32, #tpu.memory_space<vmem>>, %arg8: memref<1024x128xf32, #tpu.memory_space<vmem>>, %arg9: memref<128x1024xf32, #tpu.memory_space<vmem>>, %arg10: memref<1x1024xf32, #tpu.memory_space<vmem>>, %arg11: memref<2x8x1024xf32, #tpu.memory_space<vmem>>) attributes {dimension_semantics = [], scalar_prefetch = 0 : i64, scratch_operands = 0 : i64, tpu.core_type = #tpu.core_type<tc>} {
    %c0 = arith.constant 0 : index
    %c0_0 = arith.constant 0 : index
    %0 = vector.load %arg8[%c0, %c0_0] : memref<1024x128xf32, #tpu.memory_space<vmem>>, vector<1024x128xf32>
    %c0_1 = arith.constant 0 : index
    %c0_2 = arith.constant 0 : index
    %1 = vector.load %arg9[%c0_1, %c0_2] : memref<128x1024xf32, #tpu.memory_space<vmem>>, vector<128x1024xf32>
    %c0_3 = arith.constant 0 : index
    %c0_4 = arith.constant 0 : index
    %2 = vector.load %arg10[%c0_3, %c0_4] : memref<1x1024xf32, #tpu.memory_space<vmem>>, vector<1x1024xf32>
    %c0_5 = arith.constant 0 : index
    %c0_6 = arith.constant 0 : index
    %3 = vector.load %arg5[%c0_5, %c0_6] : memref<8x1024xf32, #tpu.memory_space<vmem>>, vector<8x1024xf32>
    %c0_i32 = arith.constant 0 : i32
    %c16_i32 = arith.constant 16 : i32
    %4 = arith.addi %c0_i32, %c16_i32 : i32
    %c1_i32 = arith.constant 1 : i32
    %5 = scf.for %arg12 = %c0_i32 to %4 step %c1_i32 iter_args(%arg13 = %3) -> (vector<8x1024xf32>)  : i32 {
      %6 = arith.index_cast %arg12 : i32 to index
      %7 = memref.load %arg0[%6] : memref<16xf32, #tpu.memory_space<smem>>
      %8 = arith.index_cast %arg12 : i32 to index
      %9 = memref.load %arg1[%8] : memref<16xf32, #tpu.memory_space<smem>>
      %10 = arith.index_cast %arg12 : i32 to index
      %11 = memref.load %arg2[%10] : memref<16xf32, #tpu.memory_space<smem>>
      %cst = arith.constant dense<0.000000e+00> : vector<8x128xf32>
      %12 = tpu.matmul %arg13, %0, %cst {dimension_numbers = #tpu.dot_dimension_numbers<[1], [0], [0], [1], [0, 0, 1, 1], [], []>} : vector<8x1024xf32>, vector<1024x128xf32>, vector<8x128xf32> -> vector<8x128xf32>
      %13 = arith.index_cast %arg12 : i32 to index
      %c0_8 = arith.constant 0 : index
      %c0_9 = arith.constant 0 : index
      %14 = vector.load %arg6[%13, %c0_8, %c0_9] : memref<16x1x128xf32, #tpu.memory_space<vmem>>, vector<1x1x128xf32>
      %15 = vector.shape_cast %14 : vector<1x1x128xf32> to vector<1x128xf32>
      %16 = vector.broadcast %15 : vector<1x128xf32> to vector<8x128xf32>
      %17 = arith.addf %12, %16 : vector<8x128xf32>
      %18 = math.tanh %17 : vector<8x128xf32>
      %cst_10 = arith.constant dense<0.000000e+00> : vector<8x1024xf32>
      %19 = tpu.matmul %18, %1, %cst_10 {dimension_numbers = #tpu.dot_dimension_numbers<[1], [0], [0], [1], [0, 0, 1, 1], [], []>} : vector<8x128xf32>, vector<128x1024xf32>, vector<8x1024xf32> -> vector<8x1024xf32>
      %20 = vector.broadcast %2 : vector<1x1024xf32> to vector<8x1024xf32>
      %21 = arith.addf %19, %20 : vector<8x1024xf32>
      %22 = vector.broadcast %7 : f32 to vector<8x1024xf32>
      %23 = arith.mulf %22, %arg13 : vector<8x1024xf32>
      %24 = vector.broadcast %9 : f32 to vector<8x1024xf32>
      %25 = arith.mulf %24, %21 : vector<8x1024xf32>
      %26 = arith.subf %23, %25 : vector<8x1024xf32>
      %27 = arith.index_cast %arg12 : i32 to index
      %c0_11 = arith.constant 0 : index
      %c0_12 = arith.constant 0 : index
      %28 = vector.load %arg7[%27, %c0_11, %c0_12] : memref<16x8x1024xf32, #tpu.memory_space<vmem>>, vector<1x8x1024xf32>
      %29 = vector.shape_cast %28 : vector<1x8x1024xf32> to vector<8x1024xf32>
      %30 = vector.broadcast %11 : f32 to vector<8x1024xf32>
      %31 = arith.mulf %30, %29 : vector<8x1024xf32>
      %32 = arith.addf %26, %31 : vector<8x1024xf32>
      %33 = arith.index_cast %arg12 : i32 to index
      %34 = memref.load %arg3[%33] : memref<16xi32, #tpu.memory_space<smem>>
      %c1_i32_13 = arith.constant 1 : i32
      %35 = arith.cmpi eq, %34, %c1_i32_13 : i32
      %36 = arith.extui %35 : i1 to i32
      %c0_i32_14 = arith.constant 0 : i32
      %37 = arith.cmpi ne, %36, %c0_i32_14 : i32
      scf.if %37 {
        %cst_15 = arith.constant -1.000000e+00 : f32
        %cst_16 = arith.constant 1.000000e+00 : f32
        %38 = vector.broadcast %cst_15 : f32 to vector<8x1024xf32>
        %39 = arith.maximumf %38, %32 : vector<8x1024xf32>
        %40 = vector.broadcast %cst_16 : f32 to vector<8x1024xf32>
        %41 = arith.minimumf %40, %39 : vector<8x1024xf32>
        %42 = arith.index_cast %arg12 : i32 to index
        %43 = memref.load %arg4[%42] : memref<16xi32, #tpu.memory_space<smem>>
        %44 = arith.index_cast %43 : i32 to index
        %c0_17 = arith.constant 0 : index
        %c0_18 = arith.constant 0 : index
        %45 = vector.load %arg11[%44, %c0_17, %c0_18] : memref<2x8x1024xf32, #tpu.memory_space<vmem>>, vector<1x8x1024xf32>
        %46 = vector.shape_cast %45 : vector<1x8x1024xf32> to vector<8x1024xf32>
        %47 = vector.shape_cast %41 : vector<8x1024xf32> to vector<1x8x1024xf32>
        tpu.vector_store %arg11[%44, %c0_17, %c0_18], %47 {strides = array<i32>} : memref<2x8x1024xf32, #tpu.memory_space<vmem>>, vector<1x8x1024xf32>,
      } else {
      }
      scf.yield %32 : vector<8x1024xf32>
    }
    %c16_i32_7 = arith.constant 16 : i32
    return
  }
}

</mosaic_0001>

<llo_original>
// kernel: tpu_custom_call.1
$region0: #{tpu_custom_call.1}
  #allocation0 [shape = 'u32[]', space=smem, size = 0x4, offset = 0x4, fixed_abs, tag = 'smem constant byte address 0x4 - core index']
  #allocation1 [shape = 'u32[144,128]{1,0:T(1,128)}', space=vmem, size = 0x12000, scoped, tag = 'internal scratch']
  %s0 = inlined_call_operand.hbm [shape: f32[16], index: 0, kind: input, shape index: {}]
  %s1 = inlined_call_operand.vmem [shape: f32[16], index: 1, kind: input, shape index: {}]
  %s2 = inlined_call_operand.vmem [shape: f32[16], index: 2, kind: input, shape index: {}]
  %s3 = inlined_call_operand.vmem [shape: s32[16], index: 3, kind: input, shape index: {}]
  %s4 = inlined_call_operand.vmem [shape: s32[16], index: 4, kind: input, shape index: {}]
  %s5 = inlined_call_operand.hbm [shape: f32[8,1024], index: 5, kind: input, shape index: {}]
  %s6 = inlined_call_operand.hbm [shape: f32[16,1,128], index: 6, kind: input, shape index: {}]
  %s7 = inlined_call_operand.hbm [shape: f32[16,8,1024], index: 7, kind: input, shape index: {}]
  %s8 = inlined_call_operand.hbm [shape: f32[1024,128], index: 8, kind: input, shape index: {}]
  %s9 = inlined_call_operand.hbm [shape: f32[128,1024], index: 9, kind: input, shape index: {}]
  %s10 = inlined_call_operand.vmem [shape: f32[1,1024], index: 10, kind: input, shape index: {}]
  %s11 = inlined_call_operand.hbm [shape: f32[2,8,1024], index: 11, kind: output, shape index: {}]
  %s12 = sld [smem:[#allocation0]]
  $region105: #{tpu_custom_call.1} parent=0
    _
  %s14 = ssub.s32 1, %s12
  %s15 = scalar_select 0, %s14, %s12
  $region1: #{tpu_custom_call.1} parent=0
    #allocation2 [shape = 'u8[512]{0}', space=smem, size = 0x200, scoped, tag = 'input window, operand 0, single buffered']
    #allocation3 [shape = 's32[1]{0}', space=sflag, size = 0x4, scoped, tag = 'scoped memory for tpu_custom_call.1']
    #allocation4 [shape = 's32[1]{0}', space=sflag, size = 0x4, scoped, tag = 'scoped memory for tpu_custom_call.1']
    #allocation5 [shape = 's32[1]{0}', space=sflag, size = 0x4, scoped, tag = 'scoped memory for tpu_custom_call.1']
    #allocation6 [shape = 's32[1]{0}', space=sflag, size = 0x4, scoped, tag = 'scoped memory for tpu_custom_call.1']
    #allocation7 [shape = 'u8[512]{0}', space=smem, size = 0x200, scoped, tag = 'input window, operand 1, single buffered']
    #allocation8 [shape = 'u8[512]{0}', space=smem, size = 0x200, scoped, tag = 'input window, operand 2, single buffered']
    #allocation9 [shape = 's32[1]{0}', space=sflag, size = 0x4, scoped, tag = 'scoped memory for tpu_custom_call.1']
    #allocation10 [shape = 'u8[512]{0}', space=smem, size = 0x200, scoped, tag = 'input window, operand 3, single buffered']
    #allocation11 [shape = 'u8[512]{0}', space=smem, size = 0x200, scoped, tag = 'input window, operand 4, single buffered']
    #allocation12 [shape = 's32[1]{0}', space=sflag, size = 0x4, scoped, tag = 'scoped memory for tpu_custom_call.1']
    #allocation13 [shape = 'u8[32768]{0}', space=vmem, size = 0x8000, scoped, tag = 'input window, operand 5, single buffered']
    #allocation14 [shape = 'u8[8192]{0}', space=vmem, size = 0x2000, scoped, tag = 'input window, operand 6, single buffered']
    #allocation15 [shape = 's32[1]{0}', space=sflag, size = 0x4, scoped, tag = 'scoped memory for tpu_custom_call.1']
    #allocation16 [shape = 'u8[524288]{0}', space=vmem, size = 0x80000, scoped, tag = 'input window, operand 7, single buffered']
    #allocation17 [shape = 'u8[524288]{0}', space=vmem, size = 0x80000, scoped, tag = 'input window, operand 8, single buffered']
    #allocation18 [shape = 's32[1]{0}', space=sflag, size = 0x4, scoped, tag = 'scoped memory for tpu_custom_call.1']
    #allocation19 [shape = 'u8[524288]{0}', space=vmem, size = 0x80000, scoped, tag = 'input window, operand 9, single buffered']
    #allocation20 [shape = 'u8[65536]{0}', space=vmem, size = 0x10000, scoped, tag = 'output window, operand 0, single buffered']
    %16 = vsyncpa [#allocation5], 0
    %17 = vsyncpa [#allocation6], 0
    %18 = vsyncpa [#allocation9], 0
    %19 = vsyncpa [#allocation12], 0
    %20 = vsyncpa [#allocation3], 0
    %21 = vsyncpa [#allocation15], 0
    %22 = vsyncpa [#allocation18], 0
    %23 = vsyncpa [#allocation4], 0
    // Predicated region
    $region2: #{tpu_custom_call.1} parent=1 // pred_check
      _
    $region3: #{tpu_custom_call.1} parent=1 // pred_check_branch
      %25 = sbr.rel (0) target = $region5
    $region4: #{tpu_custom_call.1} parent=1 // pred_region
      %s27 = ssub.s32 16, 16
      %28 = vsyncadd [#allocation5], %s27
      %31 = dma.hbm_to_smem %s0, 16, [#allocation2], [#allocation5]
    $region5: #{tpu_custom_call.1} parent=1 // pred_fallthru
      _
    // Predicated region
    $region6: #{tpu_custom_call.1} parent=1 // pred_check
      _
    $region7: #{tpu_custom_call.1} parent=1 // pred_check_branch
      %33 = sbr.rel (0) target = $region9
    $region8: #{tpu_custom_call.1} parent=1 // pred_region
      %s35 = ssub.s32 16, 16
      %36 = vsyncadd [#allocation6], %s35
      %s38 = sshll.u32 %s1, 4
      %s39 = int_to_ptr.vmem [resolvable:$true] %s38
      %41 = dma.vmem_to_smem %s39, 16, [#allocation7], [#allocation6]
    $region9: #{tpu_custom_call.1} parent=1 // pred_fallthru
      _
    // Predicated region
    $region10: #{tpu_custom_call.1} parent=1 // pred_check
      _
    $region11: #{tpu_custom_call.1} parent=1 // pred_check_branch
      %43 = sbr.rel (0) target = $region13
    $region12: #{tpu_custom_call.1} parent=1 // pred_region
      %s45 = ssub.s32 16, 16
      %46 = vsyncadd [#allocation9], %s45
      %s48 = sshll.u32 %s2, 4
      %s49 = int_to_ptr.vmem [resolvable:$true] %s48
      %51 = dma.vmem_to_smem %s49, 16, [#allocation8], [#allocation9]
    $region13: #{tpu_custom_call.1} parent=1 // pred_fallthru
      _
    // Predicated region
    $region14: #{tpu_custom_call.1} parent=1 // pred_check
      _
    $region15: #{tpu_custom_call.1} parent=1 // pred_check_branch
      %53 = sbr.rel (0) target = $region17
    $region16: #{tpu_custom_call.1} parent=1 // pred_region
      %s55 = ssub.s32 16, 16
      %56 = vsyncadd [#allocation9], %s55
      %s58 = sshll.u32 %s3, 4
      %s59 = int_to_ptr.vmem [resolvable:$true] %s58
      %61 = dma.vmem_to_smem %s59, 16, [#allocation10], [#allocation9]
    $region17: #{tpu_custom_call.1} parent=1 // pred_fallthru
      _
    // Predicated region
    $region18: #{tpu_custom_call.1} parent=1 // pred_check
      _
    $region19: #{tpu_custom_call.1} parent=1 // pred_check_branch
      %63 = sbr.rel (0) target = $region21
    $region20: #{tpu_custom_call.1} parent=1 // pred_region
      %s65 = ssub.s32 16, 16
      %66 = vsyncadd [#allocation12], %s65
      %s68 = sshll.u32 %s4, 4
      %s69 = int_to_ptr.vmem [resolvable:$true] %s68
      %71 = dma.vmem_to_smem %s69, 16, [#allocation11], [#allocation12]
    $region21: #{tpu_custom_call.1} parent=1 // pred_fallthru
      _
    // Predicated region
    $region22: #{tpu_custom_call.1} parent=1 // pred_check
      _
    $region23: #{tpu_custom_call.1} parent=1 // pred_check_branch
      %73 = sbr.rel (0) target = $region25
    $region24: #{tpu_custom_call.1} parent=1 // pred_region
      %s75 = ssub.s32 1024, 1024
      %76 = vsyncadd [#allocation3], %s75
      %s78 = sshll.u32 [#allocation13], 4
      %s79 = int_to_ptr.vmem [resolvable:$true] %s78
      %81 = dma.hbm_to_vmem [thread:$0]  %s5, 1024, %s79, [#allocation3]
    $region25: #{tpu_custom_call.1} parent=1 // pred_fallthru
      _
    // Predicated region
    $region26: #{tpu_custom_call.1} parent=1 // pred_check
      _
    $region27: #{tpu_custom_call.1} parent=1 // pred_check_branch
      %83 = sbr.rel (0) target = $region29
    $region28: #{tpu_custom_call.1} parent=1 // pred_region
      %s85 = ssub.s32 256, 256
      %86 = vsyncadd [#allocation15], %s85
      %s87 = sshll.u32 [#allocation14], 4
      %s88 = int_to_ptr.vmem [resolvable:$true] %s87
      %93 = dma.hbm_to_vmem [thread:$0]  %s6, 256, %s88, [#allocation15], 16, 16, 1
    $region29: #{tpu_custom_call.1} parent=1 // pred_fallthru
      _
    // Predicated region
    $region30: #{tpu_custom_call.1} parent=1 // pred_check
      _
    $region31: #{tpu_custom_call.1} parent=1 // pred_check_branch
      %95 = sbr.rel (0) target = $region33
    $region32: #{tpu_custom_call.1} parent=1 // pred_region
      %s97 = ssub.s32 16384, 16384
      %98 = vsyncadd [#allocation15], %s97
      %s99 = sshll.u32 [#allocation16], 4
      %s100 = int_to_ptr.vmem [resolvable:$true] %s99
      %105 = dma.hbm_to_vmem [thread:$0]  %s7, 16384, %s100, [#allocation15], 1024, 1024, 64
    $region33: #{tpu_custom_call.1} parent=1 // pred_fallthru
      _
    // Predicated region
    $region34: #{tpu_custom_call.1} parent=1 // pred_check
      _
    $region35: #{tpu_custom_call.1} parent=1 // pred_check_branch
      %107 = sbr.rel (0) target = $region37
    $region36: #{tpu_custom_call.1} parent=1 // pred_region
      %s109 = ssub.s32 16384, 16384
      %110 = vsyncadd [#allocation18], %s109
      %s111 = sshll.u32 [#allocation17], 4
      %s112 = int_to_ptr.vmem [resolvable:$true] %s111
      %117 = dma.hbm_to_vmem [thread:$0]  %s8, 16384, %s112, [#allocation18], 128, 128, 8
    $region37: #{tpu_custom_call.1} parent=1 // pred_fallthru
      _
    // Predicated region
    $region38: #{tpu_custom_call.1} parent=1 // pred_check
      _
    $region39: #{tpu_custom_call.1} parent=1 // pred_check_branch
      %119 = sbr.rel (0) target = $region41
    $region40: #{tpu_custom_call.1} parent=1 // pred_region
      %s121 = ssub.s32 16384, 16384
      %122 = vsyncadd [#allocation18], %s121
      %s123 = sshll.u32 [#allocation19], 4
      %s124 = int_to_ptr.vmem [resolvable:$true] %s123
      %129 = dma.hbm_to_vmem [thread:$0]  %s9, 16384, %s124, [#allocation18], 1024, 1024, 64
    $region41: #{tpu_custom_call.1} parent=1 // pred_fallthru
      _
    // Predicated region
    $region42: #{tpu_custom_call.1} parent=1 // pred_check
      _
    $region43: #{tpu_custom_call.1} parent=1 // pred_check_branch
      %131 = sbr.rel (0) target = $region45
    $region44: #{tpu_custom_call.1} parent=1 // pred_region
      _
    $region45: #{tpu_custom_call.1} parent=1 // pred_fallthru
      _
    // Predicated region
    $region46: #{tpu_custom_call.1} parent=1 // pred_check
      _
    $region47: #{tpu_custom_call.1} parent=1 // pred_check_branch
      %133 = sbr.rel (0) target = $region49
    $region48: #{tpu_custom_call.1} parent=1 // pred_region
      %134 = dma.done [#allocation5], 16
    $region49: #{tpu_custom_call.1} parent=1 // pred_fallthru
      _
    // Predicated region
    $region50: #{tpu_custom_call.1} parent=1 // pred_check
      _
    $region51: #{tpu_custom_call.1} parent=1 // pred_check_branch
      %136 = sbr.rel (0) target = $region53
    $region52: #{tpu_custom_call.1} parent=1 // pred_region
      %137 = dma.done [#allocation6], 16
    $region53: #{tpu_custom_call.1} parent=1 // pred_fallthru
      _
    // Predicated region
    $region54: #{tpu_custom_call.1} parent=1 // pred_check
      _
    $region55: #{tpu_custom_call.1} parent=1 // pred_check_branch
      %139 = sbr.rel (0) target = $region57
    $region56: #{tpu_custom_call.1} parent=1 // pred_region
      %140 = dma.done [#allocation9], 16
    $region57: #{tpu_custom_call.1} parent=1 // pred_fallthru
      _
    // Predicated region
    $region58: #{tpu_custom_call.1} parent=1 // pred_check
      _
    $region59: #{tpu_custom_call.1} parent=1 // pred_check_branch
      %142 = sbr.rel (0) target = $region61
    $region60: #{tpu_custom_call.1} parent=1 // pred_region
      %143 = dma.done [#allocation9], 16
    $region61: #{tpu_custom_call.1} parent=1 // pred_fallthru
      _
    // Predicated region
    $region62: #{tpu_custom_call.1} parent=1 // pred_check
      _
    $region63: #{tpu_custom_call.1} parent=1 // pred_check_branch
      %145 = sbr.rel (0) target = $region65
    $region64: #{tpu_custom_call.1} parent=1 // pred_region
      %146 = dma.done [#allocation12], 16
    $region65: #{tpu_custom_call.1} parent=1 // pred_fallthru
      _
    // Predicated region
    $region66: #{tpu_custom_call.1} parent=1 // pred_check
      _
    $region67: #{tpu_custom_call.1} parent=1 // pred_check_branch
      %148 = sbr.rel (0) target = $region69
    $region68: #{tpu_custom_call.1} parent=1 // pred_region
      %149 = dma.done [#allocation3], 1024
    $region69: #{tpu_custom_call.1} parent=1 // pred_fallthru
      _
    // Predicated region
    $region70: #{tpu_custom_call.1} parent=1 // pred_check
      _
    $region71: #{tpu_custom_call.1} parent=1 // pred_check_branch
      %151 = sbr.rel (0) target = $region73
    $region72: #{tpu_custom_call.1} parent=1 // pred_region
      %152 = dma.done [#allocation15], 256
    $region73: #{tpu_custom_call.1} parent=1 // pred_fallthru
      _
    // Predicated region
    $region74: #{tpu_custom_call.1} parent=1 // pred_check
      _
    $region75: #{tpu_custom_call.1} parent=1 // pred_check_branch
      %154 = sbr.rel (0) target = $region77
    $region76: #{tpu_custom_call.1} parent=1 // pred_region
      %155 = dma.done [#allocation15], 16384
    $region77: #{tpu_custom_call.1} parent=1 // pred_fallthru
      _
    // Predicated region
    $region78: #{tpu_custom_call.1} parent=1 // pred_check
      _
    $region79: #{tpu_custom_call.1} parent=1 // pred_check_branch
      %157 = sbr.rel (0) target = $region81
    $region80: #{tpu_custom_call.1} parent=1 // pred_region
      %158 = dma.done [#allocation18], 16384
    $region81: #{tpu_custom_call.1} parent=1 // pred_fallthru
      _
    // Predicated region
    $region82: #{tpu_custom_call.1} parent=1 // pred_check
      _
    $region83: #{tpu_custom_call.1} parent=1 // pred_check_branch
      %160 = sbr.rel (0) target = $region85
    $region84: #{tpu_custom_call.1} parent=1 // pred_region
      %161 = dma.done [#allocation18], 16384
    $region85: #{tpu_custom_call.1} parent=1 // pred_fallthru
      _
    %162 = sfence
    %v163 = vld [vmem:[#allocation17] sm:$0xff]
    %v164 = vld [vmem:[#allocation17 + $0x8] sm:$0xff]
    %v165 = vld [vmem:[#allocation17 + $0x10] sm:$0xff]
    %v166 = vld [vmem:[#allocation17 + $0x18] sm:$0xff]
    %v167 = vld [vmem:[#allocation17 + $0x20] sm:$0xff]
    %v168 = vld [vmem:[#allocation17 + $0x28] sm:$0xff]
    %v169 = vld [vmem:[#allocation17 + $0x30] sm:$0xff]
    %v170 = vld [vmem:[#allocation17 + $0x38] sm:$0xff]
    %v171 = vld [vmem:[#allocation17 + $0x40] sm:$0xff]
    %v172 = vld [vmem:[#allocation17 + $0x48] sm:$0xff]
    %v173 = vld [vmem:[#allocation17 + $0x50] sm:$0xff]
    %v174 = vld [vmem:[#allocation17 + $0x58] sm:$0xff]
    %v175 = vld [vmem:[#allocation17 + $0x60] sm:$0xff]
    %v176 = vld [vmem:[#allocation17 + $0x68] sm:$0xff]
    %v177 = vld [vmem:[#allocation17 + $0x70] sm:$0xff]
    %v178 = vld [vmem:[#allocation17 + $0x78] sm:$0xff]
    %v179 = vld [vmem:[#allocation17 + $0x80] sm:$0xff]
    %v180 = vld [vmem:[#allocation17 + $0x88] sm:$0xff]
    %v181 = vld [vmem:[#allocation17 + $0x90] sm:$0xff]
    %v182 = vld [vmem:[#allocation17 + $0x98] sm:$0xff]
    %v183 = vld [vmem:[#allocation17 + $0xa0] sm:$0xff]
    %v184 = vld [vmem:[#allocation17 + $0xa8] sm:$0xff]
    %v185 = vld [vmem:[#allocation17 + $0xb0] sm:$0xff]
    %v186 = vld [vmem:[#allocation17 + $0xb8] sm:$0xff]
    %v187 = vld [vmem:[#allocation17 + $0xc0] sm:$0xff]
    %v188 = vld [vmem:[#allocation17 + $0xc8] sm:$0xff]
    %v189 = vld [vmem:[#allocation17 + $0xd0] sm:$0xff]
    %v190 = vld [vmem:[#allocation17 + $0xd8] sm:$0xff]
    %v191 = vld [vmem:[#allocation17 + $0xe0] sm:$0xff]
    %v192 = vld [vmem:[#allocation17 + $0xe8] sm:$0xff]
    %v193 = vld [vmem:[#allocation17 + $0xf0] sm:$0xff]
    %v194 = vld [vmem:[#allocation17 + $0xf8] sm:$0xff]
    %v195 = vld [vmem:[#allocation17 + $0x100] sm:$0xff]
    %v196 = vld [vmem:[#allocation17 + $0x108] sm:$0xff]
    %v197 = vld [vmem:[#allocation17 + $0x110] sm:$0xff]
    %v198 = vld [vmem:[#allocation17 + $0x118] sm:$0xff]
    %v199 = vld [vmem:[#allocation17 + $0x120] sm:$0xff]
    %v200 = vld [vmem:[#allocation17 + $0x128] sm:$0xff]
    %v201 = vld [vmem:[#allocation17 + $0x130] sm:$0xff]
    %v202 = vld [vmem:[#allocation17 + $0x138] sm:$0xff]
    %v203 = vld [vmem:[#allocation17 + $0x140] sm:$0xff]
    %v204 = vld [vmem:[#allocation17 + $0x148] sm:$0xff]
    %v205 = vld [vmem:[#allocation17 + $0x150] sm:$0xff]
    %v206 = vld [vmem:[#allocation17 + $0x158] sm:$0xff]
    %v207 = vld [vmem:[#allocation17 + $0x160] sm:$0xff]
    %v208 = vld [vmem:[#allocation17 + $0x168] sm:$0xff]
    %v209 = vld [vmem:[#allocation17 + $0x170] sm:$0xff]
    %v210 = vld [vmem:[#allocation17 + $0x178] sm:$0xff]
    %v211 = vld [vmem:[#allocation17 + $0x180] sm:$0xff]
    %v212 = vld [vmem:[#allocation17 + $0x188] sm:$0xff]
    %v213 = vld [vmem:[#allocation17 + $0x190] sm:$0xff]
    %v214 = vld [vmem:[#allocation17 + $0x198] sm:$0xff]
    %v215 = vld [vmem:[#allocation17 + $0x1a0] sm:$0xff]
    %v216 = vld [vmem:[#allocation17 + $0x1a8] sm:$0xff]
    %v217 = vld [vmem:[#allocation17 + $0x1b0] sm:$0xff]
    %v218 = vld [vmem:[#allocation17 + $0x1b8] sm:$0xff]
    %v219 = vld [vmem:[#allocation17 + $0x1c0] sm:$0xff]
    %v220 = vld [vmem:[#allocation17 + $0x1c8] sm:$0xff]
    %v221 = vld [vmem:[#allocation17 + $0x1d0] sm:$0xff]
    %v222 = vld [vmem:[#allocation17 + $0x1d8] sm:$0xff]
    %v223 = vld [vmem:[#allocation17 + $0x1e0] sm:$0xff]
    %v224 = vld [vmem:[#allocation17 + $0x1e8] sm:$0xff]
    %v225 = vld [vmem:[#allocation17 + $0x1f0] sm:$0xff]
    %v226 = vld [vmem:[#allocation17 + $0x1f8] sm:$0xff]
    %v227 = vld [vmem:[#allocation17 + $0x200] sm:$0xff]
    %v228 = vld [vmem:[#allocation17 + $0x208] sm:$0xff]
    %v229 = vld [vmem:[#allocation17 + $0x210] sm:$0xff]
    %v230 = vld [vmem:[#allocation17 + $0x218] sm:$0xff]
    %v231 = vld [vmem:[#allocation17 + $0x220] sm:$0xff]
    %v232 = vld [vmem:[#allocation17 + $0x228] sm:$0xff]
    %v233 = vld [vmem:[#allocation17 + $0x230] sm:$0xff]
    %v234 = vld [vmem:[#allocation17 + $0x238] sm:$0xff]
    %v235 = vld [vmem:[#allocation17 + $0x240] sm:$0xff]
    %v236 = vld [vmem:[#allocation17 + $0x248] sm:$0xff]
    %v237 = vld [vmem:[#allocation17 + $0x250] sm:$0xff]
    %v238 = vld [vmem:[#allocation17 + $0x258] sm:$0xff]
    %v239 = vld [vmem:[#allocation17 + $0x260] sm:$0xff]
    %v240 = vld [vmem:[#allocation17 + $0x268] sm:$0xff]
    %v241 = vld [vmem:[#allocation17 + $0x270] sm:$0xff]
    %v242 = vld [vmem:[#allocation17 + $0x278] sm:$0xff]
    %v243 = vld [vmem:[#allocation17 + $0x280] sm:$0xff]
    %v244 = vld [vmem:[#allocation17 + $0x288] sm:$0xff]
    %v245 = vld [vmem:[#allocation17 + $0x290] sm:$0xff]
    %v246 = vld [vmem:[#allocation17 + $0x298] sm:$0xff]
    %v247 = vld [vmem:[#allocation17 + $0x2a0] sm:$0xff]
    %v248 = vld [vmem:[#allocation17 + $0x2a8] sm:$0xff]
    %v249 = vld [vmem:[#allocation17 + $0x2b0] sm:$0xff]
    %v250 = vld [vmem:[#allocation17 + $0x2b8] sm:$0xff]
    %v251 = vld [vmem:[#allocation17 + $0x2c0] sm:$0xff]
    %v252 = vld [vmem:[#allocation17 + $0x2c8] sm:$0xff]
    %v253 = vld [vmem:[#allocation17 + $0x2d0] sm:$0xff]
    %v254 = vld [vmem:[#allocation17 + $0x2d8] sm:$0xff]
    %v255 = vld [vmem:[#allocation17 + $0x2e0] sm:$0xff]
    %v256 = vld [vmem:[#allocation17 + $0x2e8] sm:$0xff]
    %v257 = vld [vmem:[#allocation17 + $0x2f0] sm:$0xff]
    %v258 = vld [vmem:[#allocation17 + $0x2f8] sm:$0xff]
    %v259 = vld [vmem:[#allocation17 + $0x300] sm:$0xff]
    %v260 = vld [vmem:[#allocation17 + $0x308] sm:$0xff]
    %v261 = vld [vmem:[#allocation17 + $0x310] sm:$0xff]
    %v262 = vld [vmem:[#allocation17 + $0x318] sm:$0xff]
    %v263 = vld [vmem:[#allocation17 + $0x320] sm:$0xff]
    %v264 = vld [vmem:[#allocation17 + $0x328] sm:$0xff]
    %v265 = vld [vmem:[#allocation17 + $0x330] sm:$0xff]
    %v266 = vld [vmem:[#allocation17 + $0x338] sm:$0xff]
    %v267 = vld [vmem:[#allocation17 + $0x340] sm:$0xff]
    %v268 = vld [vmem:[#allocation17 + $0x348] sm:$0xff]
    %v269 = vld [vmem:[#allocation17 + $0x350] sm:$0xff]
    %v270 = vld [vmem:[#allocation17 + $0x358] sm:$0xff]
    %v271 = vld [vmem:[#allocation17 + $0x360] sm:$0xff]
    %v272 = vld [vmem:[#allocation17 + $0x368] sm:$0xff]
    %v273 = vld [vmem:[#allocation17 + $0x370] sm:$0xff]
    %v274 = vld [vmem:[#allocation17 + $0x378] sm:$0xff]
    %v275 = vld [vmem:[#allocation17 + $0x380] sm:$0xff]
    %v276 = vld [vmem:[#allocation17 + $0x388] sm:$0xff]
    %v277 = vld [vmem:[#allocation17 + $0x390] sm:$0xff]
    %v278 = vld [vmem:[#allocation17 + $0x398] sm:$0xff]
    %v279 = vld [vmem:[#allocation17 + $0x3a0] sm:$0xff]
    %v280 = vld [vmem:[#allocation17 + $0x3a8] sm:$0xff]
    %v281 = vld [vmem:[#allocation17 + $0x3b0] sm:$0xff]
    %v282 = vld [vmem:[#allocation17 + $0x3b8] sm:$0xff]
    %v283 = vld [vmem:[#allocation17 + $0x3c0] sm:$0xff]
    %v284 = vld [vmem:[#allocation17 + $0x3c8] sm:$0xff]
    %v285 = vld [vmem:[#allocation17 + $0x3d0] sm:$0xff]
    %v286 = vld [vmem:[#allocation17 + $0x3d8] sm:$0xff]
    %v287 = vld [vmem:[#allocation17 + $0x3e0] sm:$0xff]
    %v288 = vld [vmem:[#allocation17 + $0x3e8] sm:$0xff]
    %v289 = vld [vmem:[#allocation17 + $0x3f0] sm:$0xff]
    %v290 = vld [vmem:[#allocation17 + $0x3f8] sm:$0xff]
    %v291 = vld [vmem:[#allocation19] sm:$0xff]
    %v292 = vld [vmem:[#allocation19 + $0x8] sm:$0xff]
    %v293 = vld [vmem:[#allocation19 + $0x10] sm:$0xff]
    %v294 = vld [vmem:[#allocation19 + $0x18] sm:$0xff]
    %v295 = vld [vmem:[#allocation19 + $0x20] sm:$0xff]
    %v296 = vld [vmem:[#allocation19 + $0x28] sm:$0xff]
    %v297 = vld [vmem:[#allocation19 + $0x30] sm:$0xff]
    %v298 = vld [vmem:[#allocation19 + $0x38] sm:$0xff]
    %v299 = vld [vmem:[#allocation19 + $0x40] sm:$0xff]
    %v300 = vld [vmem:[#allocation19 + $0x48] sm:$0xff]
    %v301 = vld [vmem:[#allocation19 + $0x50] sm:$0xff]
    %v302 = vld [vmem:[#allocation19 + $0x58] sm:$0xff]
    %v303 = vld [vmem:[#allocation19 + $0x60] sm:$0xff]
    %v304 = vld [vmem:[#allocation19 + $0x68] sm:$0xff]
    %v305 = vld [vmem:[#allocation19 + $0x70] sm:$0xff]
    %v306 = vld [vmem:[#allocation19 + $0x78] sm:$0xff]
    %v307 = vld [vmem:[#allocation19 + $0x80] sm:$0xff]
    %v308 = vld [vmem:[#allocation19 + $0x88] sm:$0xff]
    %v309 = vld [vmem:[#allocation19 + $0x90] sm:$0xff]
    %v310 = vld [vmem:[#allocation19 + $0x98] sm:$0xff]
    %v311 = vld [vmem:[#allocation19 + $0xa0] sm:$0xff]
    %v312 = vld [vmem:[#allocation19 + $0xa8] sm:$0xff]
    %v313 = vld [vmem:[#allocation19 + $0xb0] sm:$0xff]
    %v314 = vld [vmem:[#allocation19 + $0xb8] sm:$0xff]
    %v315 = vld [vmem:[#allocation19 + $0xc0] sm:$0xff]
    %v316 = vld [vmem:[#allocation19 + $0xc8] sm:$0xff]
    %v317 = vld [vmem:[#allocation19 + $0xd0] sm:$0xff]
    %v318 = vld [vmem:[#allocation19 + $0xd8] sm:$0xff]
    %v319 = vld [vmem:[#allocation19 + $0xe0] sm:$0xff]
    %v320 = vld [vmem:[#allocation19 + $0xe8] sm:$0xff]
    %v321 = vld [vmem:[#allocation19 + $0xf0] sm:$0xff]
    %v322 = vld [vmem:[#allocation19 + $0xf8] sm:$0xff]
    %v323 = vld [vmem:[#allocation19 + $0x100] sm:$0xff]
    %v324 = vld [vmem:[#allocation19 + $0x108] sm:$0xff]
    %v325 = vld [vmem:[#allocation19 + $0x110] sm:$0xff]
    %v326 = vld [vmem:[#allocation19 + $0x118] sm:$0xff]
    %v327 = vld [vmem:[#allocation19 + $0x120] sm:$0xff]
    %v328 = vld [vmem:[#allocation19 + $0x128] sm:$0xff]
    %v329 = vld [vmem:[#allocation19 + $0x130] sm:$0xff]
    %v330 = vld [vmem:[#allocation19 + $0x138] sm:$0xff]
    %v331 = vld [vmem:[#allocation19 + $0x140] sm:$0xff]
    %v332 = vld [vmem:[#allocation19 + $0x148] sm:$0xff]
    %v333 = vld [vmem:[#allocation19 + $0x150] sm:$0xff]
    %v334 = vld [vmem:[#allocation19 + $0x158] sm:$0xff]
    %v335 = vld [vmem:[#allocation19 + $0x160] sm:$0xff]
    %v336 = vld [vmem:[#allocation19 + $0x168] sm:$0xff]
    %v337 = vld [vmem:[#allocation19 + $0x170] sm:$0xff]
    %v338 = vld [vmem:[#allocation19 + $0x178] sm:$0xff]
    %v339 = vld [vmem:[#allocation19 + $0x180] sm:$0xff]
    %v340 = vld [vmem:[#allocation19 + $0x188] sm:$0xff]
    %v341 = vld [vmem:[#allocation19 + $0x190] sm:$0xff]
    %v342 = vld [vmem:[#allocation19 + $0x198] sm:$0xff]
    %v343 = vld [vmem:[#allocation19 + $0x1a0] sm:$0xff]
    %v344 = vld [vmem:[#allocation19 + $0x1a8] sm:$0xff]
    %v345 = vld [vmem:[#allocation19 + $0x1b0] sm:$0xff]
    %v346 = vld [vmem:[#allocation19 + $0x1b8] sm:$0xff]
    %v347 = vld [vmem:[#allocation19 + $0x1c0] sm:$0xff]
    %v348 = vld [vmem:[#allocation19 + $0x1c8] sm:$0xff]
    %v349 = vld [vmem:[#allocation19 + $0x1d0] sm:$0xff]
    %v350 = vld [vmem:[#allocation19 + $0x1d8] sm:$0xff]
    %v351 = vld [vmem:[#allocation19 + $0x1e0] sm:$0xff]
    %v352 = vld [vmem:[#allocation19 + $0x1e8] sm:$0xff]
    %v353 = vld [vmem:[#allocation19 + $0x1f0] sm:$0xff]
    %v354 = vld [vmem:[#allocation19 + $0x1f8] sm:$0xff]
    %v355 = vld [vmem:[#allocation19 + $0x200] sm:$0xff]
    %v356 = vld [vmem:[#allocation19 + $0x208] sm:$0xff]
    %v357 = vld [vmem:[#allocation19 + $0x210] sm:$0xff]
    %v358 = vld [vmem:[#allocation19 + $0x218] sm:$0xff]
    %v359 = vld [vmem:[#allocation19 + $0x220] sm:$0xff]
    %v360 = vld [vmem:[#allocation19 + $0x228] sm:$0xff]
    %v361 = vld [vmem:[#allocation19 + $0x230] sm:$0xff]
    %v362 = vld [vmem:[#allocation19 + $0x238] sm:$0xff]
    %v363 = vld [vmem:[#allocation19 + $0x240] sm:$0xff]
    %v364 = vld [vmem:[#allocation19 + $0x248] sm:$0xff]
    %v365 = vld [vmem:[#allocation19 + $0x250] sm:$0xff]
    %v366 = vld [vmem:[#allocation19 + $0x258] sm:$0xff]
    %v367 = vld [vmem:[#allocation19 + $0x260] sm:$0xff]
    %v368 = vld [vmem:[#allocation19 + $0x268] sm:$0xff]
    %v369 = vld [vmem:[#allocation19 + $0x270] sm:$0xff]
    %v370 = vld [vmem:[#allocation19 + $0x278] sm:$0xff]
    %v371 = vld [vmem:[#allocation19 + $0x280] sm:$0xff]
    %v372 = vld [vmem:[#allocation19 + $0x288] sm:$0xff]
    %v373 = vld [vmem:[#allocation19 + $0x290] sm:$0xff]
    %v374 = vld [vmem:[#allocation19 + $0x298] sm:$0xff]
    %v375 = vld [vmem:[#allocation19 + $0x2a0] sm:$0xff]
    %v376 = vld [vmem:[#allocation19 + $0x2a8] sm:$0xff]
    %v377 = vld [vmem:[#allocation19 + $0x2b0] sm:$0xff]
    %v378 = vld [vmem:[#allocation19 + $0x2b8] sm:$0xff]
    %v379 = vld [vmem:[#allocation19 + $0x2c0] sm:$0xff]
    %v380 = vld [vmem:[#allocation19 + $0x2c8] sm:$0xff]
    %v381 = vld [vmem:[#allocation19 + $0x2d0] sm:$0xff]
    %v382 = vld [vmem:[#allocation19 + $0x2d8] sm:$0xff]
    %v383 = vld [vmem:[#allocation19 + $0x2e0] sm:$0xff]
    %v384 = vld [vmem:[#allocation19 + $0x2e8] sm:$0xff]
    %v385 = vld [vmem:[#allocation19 + $0x2f0] sm:$0xff]
    %v386 = vld [vmem:[#allocation19 + $0x2f8] sm:$0xff]
    %v387 = vld [vmem:[#allocation19 + $0x300] sm:$0xff]
    %v388 = vld [vmem:[#allocation19 + $0x308] sm:$0xff]
    %v389 = vld [vmem:[#allocation19 + $0x310] sm:$0xff]
    %v390 = vld [vmem:[#allocation19 + $0x318] sm:$0xff]
    %v391 = vld [vmem:[#allocation19 + $0x320] sm:$0xff]
    %v392 = vld [vmem:[#allocation19 + $0x328] sm:$0xff]
    %v393 = vld [vmem:[#allocation19 + $0x330] sm:$0xff]
    %v394 = vld [vmem:[#allocation19 + $0x338] sm:$0xff]
    %v395 = vld [vmem:[#allocation19 + $0x340] sm:$0xff]
    %v396 = vld [vmem:[#allocation19 + $0x348] sm:$0xff]
    %v397 = vld [vmem:[#allocation19 + $0x350] sm:$0xff]
    %v398 = vld [vmem:[#allocation19 + $0x358] sm:$0xff]
    %v399 = vld [vmem:[#allocation19 + $0x360] sm:$0xff]
    %v400 = vld [vmem:[#allocation19 + $0x368] sm:$0xff]
    %v401 = vld [vmem:[#allocation19 + $0x370] sm:$0xff]
    %v402 = vld [vmem:[#allocation19 + $0x378] sm:$0xff]
    %v403 = vld [vmem:[#allocation19 + $0x380] sm:$0xff]
    %v404 = vld [vmem:[#allocation19 + $0x388] sm:$0xff]
    %v405 = vld [vmem:[#allocation19 + $0x390] sm:$0xff]
    %v406 = vld [vmem:[#allocation19 + $0x398] sm:$0xff]
    %v407 = vld [vmem:[#allocation19 + $0x3a0] sm:$0xff]
    %v408 = vld [vmem:[#allocation19 + $0x3a8] sm:$0xff]
    %v409 = vld [vmem:[#allocation19 + $0x3b0] sm:$0xff]
    %v410 = vld [vmem:[#allocation19 + $0x3b8] sm:$0xff]
    %v411 = vld [vmem:[#allocation19 + $0x3c0] sm:$0xff]
    %v412 = vld [vmem:[#allocation19 + $0x3c8] sm:$0xff]
    %v413 = vld [vmem:[#allocation19 + $0x3d0] sm:$0xff]
    %v414 = vld [vmem:[#allocation19 + $0x3d8] sm:$0xff]
    %v415 = vld [vmem:[#allocation19 + $0x3e0] sm:$0xff]
    %v416 = vld [vmem:[#allocation19 + $0x3e8] sm:$0xff]
    %v417 = vld [vmem:[#allocation19 + $0x3f0] sm:$0xff]
    %v418 = vld [vmem:[#allocation19 + $0x3f8] sm:$0xff]
    %v419 = vld [vmem:[%s10] sm:$0xff]
    %v420 = vld [vmem:[#allocation13] sm:$0xff]
    %v421 = vld [vmem:[#allocation13 + $0x8] sm:$0xff]
    %v422 = vld [vmem:[#allocation13 + $0x10] sm:$0xff]
    %v423 = vld [vmem:[#allocation13 + $0x18] sm:$0xff]
    %v424 = vld [vmem:[#allocation13 + $0x20] sm:$0xff]
    %v425 = vld [vmem:[#allocation13 + $0x28] sm:$0xff]
    %v426 = vld [vmem:[#allocation13 + $0x30] sm:$0xff]
    %v427 = vld [vmem:[#allocation13 + $0x38] sm:$0xff]
    loop: start=0, step=1, limit=16
    $region86: #{tpu_custom_call.1} parent=1 // loop_pre_header
      _
    $region87: #{tpu_custom_call.1} parent=1 // loop_header
      %s429 = sphi 0, %s433
      %p430 = scmp.ge.s32.totalorder %s429, 16
      %v434 = vphi %v420, %v1105
      %v435 = vphi %v421, %v1106
      %v436 = vphi %v422, %v1107
      %v437 = vphi %v423, %v1108
      %v438 = vphi %v424, %v1109
      %v439 = vphi %v425, %v1110
      %v440 = vphi %v426, %v1111
      %v441 = vphi %v427, %v1112
    $region88: #{tpu_custom_call.1} parent=1 // loop_header_branch
      %432 = sbr.rel (%p430) target = $region92
    $region89: #{tpu_custom_call.1} parent=1 // loop_body
      %s442 = sld [smem:[#allocation2 + %s429]]
      %s443 = sld [smem:[#allocation7 + %s429]]
      %s444 = sld [smem:[#allocation8 + %s429]]
      %s445 = scalar_lea.vmem [#allocation14], %s429
      %v446 = vld [vmem:[%s445] sm:$0x1]
      %v448 = vlaneseq
      %v449 = vshrl.u32 %v448, 7
      %v450 = vsub.s32 0, %v449
      %v451 = vrot.slane %v446, %v450
      %453 = vmatprep.subr.mxu0 0.0
      %454 = vmatpush1.msra.mxu0 %v178
      %455 = vmatprep.subr.mxu0 0.0
      %456 = vmatpush1.msra.mxu0 %v177
      %457 = vmatprep.subr.mxu0 0.0
      %458 = vmatpush1.msra.mxu0 %v176
      %459 = vmatprep.subr.mxu0 0.0
      %460 = vmatpush1.msra.mxu0 %v175
      %461 = vmatprep.subr.mxu0 0.0
      %462 = vmatpush1.msra.mxu0 %v174
      %463 = vmatprep.subr.mxu0 0.0
      %464 = vmatpush1.msra.mxu0 %v173
      %465 = vmatprep.subr.mxu0 0.0
      %466 = vmatpush1.msra.mxu0 %v172
      %467 = vmatprep.subr.mxu0 0.0
      %468 = vmatpush1.msra.mxu0 %v171
      %469 = vmatprep.subr.mxu0 0.0
      %470 = vmatpush1.msra.mxu0 %v170
      %471 = vmatprep.subr.mxu0 0.0
      %472 = vmatpush1.msra.mxu0 %v169
      %473 = vmatprep.subr.mxu0 0.0
      %474 = vmatpush1.msra.mxu0 %v168
      %475 = vmatprep.subr.mxu0 0.0
      %476 = vmatpush1.msra.mxu0 %v167
      %477 = vmatprep.subr.mxu0 0.0
      %478 = vmatpush1.msra.mxu0 %v166
      %479 = vmatprep.subr.mxu0 0.0
      %480 = vmatpush1.msra.mxu0 %v165
      %481 = vmatprep.subr.mxu0 0.0
      %482 = vmatpush1.msra.mxu0 %v164
      %483 = vmatprep.subr.mxu0 0.0
      %484 = vmatpush1.msra.mxu0 %v163
      %485 = vmatprep.subr.mxu0 0.0
      %486 = vmatpush2.msra.mxu0 %v194
      %487 = vmatprep.subr.mxu0 0.0
      %488 = vmatpush2.msra.mxu0 %v193
      %489 = vmatprep.subr.mxu0 0.0
      %490 = vmatpush2.msra.mxu0 %v192
      %491 = vmatprep.subr.mxu0 0.0
      %492 = vmatpush2.msra.mxu0 %v191
      %493 = vmatprep.subr.mxu0 0.0
      %494 = vmatpush2.msra.mxu0 %v190
      %495 = vmatprep.subr.mxu0 0.0
      %496 = vmatpush2.msra.mxu0 %v189
      %497 = vmatprep.subr.mxu0 0.0
      %498 = vmatpush2.msra.mxu0 %v188
      %499 = vmatprep.subr.mxu0 0.0
      %500 = vmatpush2.msra.mxu0 %v187
      %501 = vmatprep.subr.mxu0 0.0
      %502 = vmatpush2.msra.mxu0 %v186
      %503 = vmatprep.subr.mxu0 0.0
      %504 = vmatpush2.msra.mxu0 %v185
      %505 = vmatprep.subr.mxu0 0.0
      %506 = vmatpush2.msra.mxu0 %v184
      %507 = vmatprep.subr.mxu0 0.0
      %508 = vmatpush2.msra.mxu0 %v183
      %509 = vmatprep.subr.mxu0 0.0
      %510 = vmatpush2.msra.mxu0 %v182
      %511 = vmatprep.subr.mxu0 0.0
      %512 = vmatpush2.msra.mxu0 %v181
      %513 = vmatprep.subr.mxu0 0.0
      %514 = vmatpush2.msra.mxu0 %v180
      %515 = vmatprep.subr.mxu0 0.0
      %516 = vmatpush2.msra.mxu0 %v179
      %517 = vmatprep.mubr.f32.mxu0 %v435
      %518 = vmatmul.mubr.f32.gmra.mxu0 %v434
      %v519 = vpop.f32.mrf.mxu0
      %v520 = vadd.f32 %v451, %v519
      %v521 = vpop.f32.mrf.mxu0
      %522 = vdwg.mxu0
      %523 = vmatprep.subr.mxu0 0.0
      %524 = vmatpush1.msra.mxu0 %v210
      %525 = vmatprep.subr.mxu0 0.0
      %526 = vmatpush1.msra.mxu0 %v209
      %527 = vmatprep.subr.mxu0 0.0
      %528 = vmatpush1.msra.mxu0 %v208
      %529 = vmatprep.subr.mxu0 0.0
      %530 = vmatpush1.msra.mxu0 %v207
      %531 = vmatprep.subr.mxu0 0.0
      %532 = vmatpush1.msra.mxu0 %v206
      %533 = vmatprep.subr.mxu0 0.0
      %534 = vmatpush1.msra.mxu0 %v205
      %535 = vmatprep.subr.mxu0 0.0
      %536 = vmatpush1.msra.mxu0 %v204
      %537 = vmatprep.subr.mxu0 0.0
      %538 = vmatpush1.msra.mxu0 %v203
      %539 = vmatprep.subr.mxu0 0.0
      %540 = vmatpush1.msra.mxu0 %v202
      %541 = vmatprep.subr.mxu0 0.0
      %542 = vmatpush1.msra.mxu0 %v201
      %543 = vmatprep.subr.mxu0 0.0
      %544 = vmatpush1.msra.mxu0 %v200
      %545 = vmatprep.subr.mxu0 0.0
      %546 = vmatpush1.msra.mxu0 %v199
      %547 = vmatprep.subr.mxu0 0.0
      %548 = vmatpush1.msra.mxu0 %v198
      %549 = vmatprep.subr.mxu0 0.0
      %550 = vmatpush1.msra.mxu0 %v197
      %551 = vmatprep.subr.mxu0 0.0
      %552 = vmatpush1.msra.mxu0 %v196
      %553 = vmatprep.subr.mxu0 0.0
      %554 = vmatpush1.msra.mxu0 %v195
      %555 = vmatprep.subr.mxu0 0.0
      %556 = vmatpush2.msra.mxu0 %v226
      %557 = vmatprep.subr.mxu0 0.0
      %558 = vmatpush2.msra.mxu0 %v225
      %559 = vmatprep.subr.mxu0 0.0
      %560 = vmatpush2.msra.mxu0 %v224
      %561 = vmatprep.subr.mxu0 0.0
      %562 = vmatpush2.msra.mxu0 %v223
      %563 = vmatprep.subr.mxu0 0.0
      %564 = vmatpush2.msra.mxu0 %v222
      %565 = vmatprep.subr.mxu0 0.0
      %566 = vmatpush2.msra.mxu0 %v221
      %567 = vmatprep.subr.mxu0 0.0
      %568 = vmatpush2.msra.mxu0 %v220
      %569 = vmatprep.subr.mxu0 0.0
      %570 = vmatpush2.msra.mxu0 %v219
      %571 = vmatprep.subr.mxu0 0.0
      %572 = vmatpush2.msra.mxu0 %v218
      %573 = vmatprep.subr.mxu0 0.0
      %574 = vmatpush2.msra.mxu0 %v217
      %575 = vmatprep.subr.mxu0 0.0
      %576 = vmatpush2.msra.mxu0 %v216
      %577 = vmatprep.subr.mxu0 0.0
      %578 = vmatpush2.msra.mxu0 %v215
      %579 = vmatprep.subr.mxu0 0.0
      %580 = vmatpush2.msra.mxu0 %v214
      %581 = vmatprep.subr.mxu0 0.0
      %582 = vmatpush2.msra.mxu0 %v213
      %583 = vmatprep.subr.mxu0 0.0
      %584 = vmatpush2.msra.mxu0 %v212
      %585 = vmatprep.subr.mxu0 0.0
      %586 = vmatpush2.msra.mxu0 %v211
      %587 = vmatprep.mubr.f32.mxu0 %v437
      %588 = vmatmul.mubr.f32.gmra.mxu0 %v436
      %v589 = vpop.f32.mrf.mxu0
      %v590 = vadd.f32 %v520, %v589
      %v591 = vpop.f32.mrf.mxu0
      %592 = vdwg.mxu0
      %593 = vmatprep.subr.mxu0 0.0
      %594 = vmatpush1.msra.mxu0 %v242
      %595 = vmatprep.subr.mxu0 0.0
      %596 = vmatpush1.msra.mxu0 %v241
      %597 = vmatprep.subr.mxu0 0.0
      %598 = vmatpush1.msra.mxu0 %v240
      %599 = vmatprep.subr.mxu0 0.0
      %600 = vmatpush1.msra.mxu0 %v239
      %601 = vmatprep.subr.mxu0 0.0
      %602 = vmatpush1.msra.mxu0 %v238
      %603 = vmatprep.subr.mxu0 0.0
      %604 = vmatpush1.msra.mxu0 %v237
      %605 = vmatprep.subr.mxu0 0.0
      %606 = vmatpush1.msra.mxu0 %v236
      %607 = vmatprep.subr.mxu0 0.0
      %608 = vmatpush1.msra.mxu0 %v235
      %609 = vmatprep.subr.mxu0 0.0
      %610 = vmatpush1.msra.mxu0 %v234
      %611 = vmatprep.subr.mxu0 0.0
      %612 = vmatpush1.msra.mxu0 %v233
      %613 = vmatprep.subr.mxu0 0.0
      %614 = vmatpush1.msra.mxu0 %v232
      %615 = vmatprep.subr.mxu0 0.0
      %616 = vmatpush1.msra.mxu0 %v231
      %617 = vmatprep.subr.mxu0 0.0
      %618 = vmatpush1.msra.mxu0 %v230
      %619 = vmatprep.subr.mxu0 0.0
      %620 = vmatpush1.msra.mxu0 %v229
      %621 = vmatprep.subr.mxu0 0.0
      %622 = vmatpush1.msra.mxu0 %v228
      %623 = vmatprep.subr.mxu0 0.0
      %624 = vmatpush1.msra.mxu0 %v227
      %625 = vmatprep.subr.mxu0 0.0
      %626 = vmatpush2.msra.mxu0 %v258
      %627 = vmatprep.subr.mxu0 0.0
      %628 = vmatpush2.msra.mxu0 %v257
      %629 = vmatprep.subr.mxu0 0.0
      %630 = vmatpush2.msra.mxu0 %v256
      %631 = vmatprep.subr.mxu0 0.0
      %632 = vmatpush2.msra.mxu0 %v255
      %633 = vmatprep.subr.mxu0 0.0
      %634 = vmatpush2.msra.mxu0 %v254
      %635 = vmatprep.subr.mxu0 0.0
      %636 = vmatpush2.msra.mxu0 %v253
      %637 = vmatprep.subr.mxu0 0.0
      %638 = vmatpush2.msra.mxu0 %v252
      %639 = vmatprep.subr.mxu0 0.0
      %640 = vmatpush2.msra.mxu0 %v251
      %641 = vmatprep.subr.mxu0 0.0
      %642 = vmatpush2.msra.mxu0 %v250
      %643 = vmatprep.subr.mxu0 0.0
      %644 = vmatpush2.msra.mxu0 %v249
      %645 = vmatprep.subr.mxu0 0.0
      %646 = vmatpush2.msra.mxu0 %v248
      %647 = vmatprep.subr.mxu0 0.0
      %648 = vmatpush2.msra.mxu0 %v247
      %649 = vmatprep.subr.mxu0 0.0
      %650 = vmatpush2.msra.mxu0 %v246
      %651 = vmatprep.subr.mxu0 0.0
      %652 = vmatpush2.msra.mxu0 %v245
      %653 = vmatprep.subr.mxu0 0.0
      %654 = vmatpush2.msra.mxu0 %v244
      %655 = vmatprep.subr.mxu0 0.0
      %656 = vmatpush2.msra.mxu0 %v243
      %657 = vmatprep.mubr.f32.mxu0 %v439
      %658 = vmatmul.mubr.f32.gmra.mxu0 %v438
      %v659 = vpop.f32.mrf.mxu0
      %v660 = vadd.f32 %v590, %v659
      %v661 = vpop.f32.mrf.mxu0
      %662 = vdwg.mxu0
      %663 = vmatprep.subr.mxu0 0.0
      %664 = vmatpush1.msra.mxu0 %v274
      %665 = vmatprep.subr.mxu0 0.0
      %666 = vmatpush1.msra.mxu0 %v273
      %667 = vmatprep.subr.mxu0 0.0
      %668 = vmatpush1.msra.mxu0 %v272
      %669 = vmatprep.subr.mxu0 0.0
      %670 = vmatpush1.msra.mxu0 %v271
      %671 = vmatprep.subr.mxu0 0.0
      %672 = vmatpush1.msra.mxu0 %v270
      %673 = vmatprep.subr.mxu0 0.0
      %674 = vmatpush1.msra.mxu0 %v269
      %675 = vmatprep.subr.mxu0 0.0
      %676 = vmatpush1.msra.mxu0 %v268
      %677 = vmatprep.subr.mxu0 0.0
      %678 = vmatpush1.msra.mxu0 %v267
      %679 = vmatprep.subr.mxu0 0.0
      %680 = vmatpush1.msra.mxu0 %v266
      %681 = vmatprep.subr.mxu0 0.0
      %682 = vmatpush1.msra.mxu0 %v265
      %683 = vmatprep.subr.mxu0 0.0
      %684 = vmatpush1.msra.mxu0 %v264
      %685 = vmatprep.subr.mxu0 0.0
      %686 = vmatpush1.msra.mxu0 %v263
      %687 = vmatprep.subr.mxu0 0.0
      %688 = vmatpush1.msra.mxu0 %v262
      %689 = vmatprep.subr.mxu0 0.0
      %690 = vmatpush1.msra.mxu0 %v261
      %691 = vmatprep.subr.mxu0 0.0
      %692 = vmatpush1.msra.mxu0 %v260
      %693 = vmatprep.subr.mxu0 0.0
      %694 = vmatpush1.msra.mxu0 %v259
      %695 = vmatprep.subr.mxu0 0.0
      %696 = vmatpush2.msra.mxu0 %v290
      %697 = vmatprep.subr.mxu0 0.0
      %698 = vmatpush2.msra.mxu0 %v289
      %699 = vmatprep.subr.mxu0 0.0
      %700 = vmatpush2.msra.mxu0 %v288
      %701 = vmatprep.subr.mxu0 0.0
      %702 = vmatpush2.msra.mxu0 %v287
      %703 = vmatprep.subr.mxu0 0.0
      %704 = vmatpush2.msra.mxu0 %v286
      %705 = vmatprep.subr.mxu0 0.0
      %706 = vmatpush2.msra.mxu0 %v285
      %707 = vmatprep.subr.mxu0 0.0
      %708 = vmatpush2.msra.mxu0 %v284
      %709 = vmatprep.subr.mxu0 0.0
      %710 = vmatpush2.msra.mxu0 %v283
      %711 = vmatprep.subr.mxu0 0.0
      %712 = vmatpush2.msra.mxu0 %v282
      %713 = vmatprep.subr.mxu0 0.0
      %714 = vmatpush2.msra.mxu0 %v281
      %715 = vmatprep.subr.mxu0 0.0
      %716 = vmatpush2.msra.mxu0 %v280
      %717 = vmatprep.subr.mxu0 0.0
      %718 = vmatpush2.msra.mxu0 %v279
      %719 = vmatprep.subr.mxu0 0.0
      %720 = vmatpush2.msra.mxu0 %v278
      %721 = vmatprep.subr.mxu0 0.0
      %722 = vmatpush2.msra.mxu0 %v277
      %723 = vmatprep.subr.mxu0 0.0
      %724 = vmatpush2.msra.mxu0 %v276
      %725 = vmatprep.subr.mxu0 0.0
      %726 = vmatpush2.msra.mxu0 %v275
      %727 = vmatprep.mubr.f32.mxu0 %v441
      %728 = vmatmul.mubr.f32.gmra.mxu0 %v440
      %v729 = vpop.f32.mrf.mxu0
      %v730 = vadd.f32 %v660, %v729
      %v731 = vpop.f32.mrf.mxu0
      %732 = vdwg.mxu0
      %v733 = vtanh.pop %v730
      %v735 = vlaneseq
      %v736 = vshrl.u32 %v735, 7
      %v737 = vsub.s32 0, %v736
      %v738 = vrot.slane %v419, %v737
      %v739 = vlaneseq
      %v740 = vshrl.u32 %v739, 7
      %v741 = vsub.s32 1, %v740
      %v742 = vrot.slane %v419, %v741
      %v743 = vlaneseq
      %v744 = vshrl.u32 %v743, 7
      %v745 = vsub.s32 2, %v744
      %v746 = vrot.slane %v419, %v745
      %v747 = vlaneseq
      %v748 = vshrl.u32 %v747, 7
      %v749 = vsub.s32 3, %v748
      %v750 = vrot.slane %v419, %v749
      %v751 = vlaneseq
      %v752 = vshrl.u32 %v751, 7
      %v753 = vsub.s32 4, %v752
      %v754 = vrot.slane %v419, %v753
      %v755 = vlaneseq
      %v756 = vshrl.u32 %v755, 7
      %v757 = vsub.s32 5, %v756
      %v758 = vrot.slane %v419, %v757
      %v759 = vlaneseq
      %v760 = vshrl.u32 %v759, 7
      %v761 = vsub.s32 6, %v760
      %v762 = vrot.slane %v419, %v761
      %v763 = vlaneseq
      %v764 = vshrl.u32 %v763, 7
      %v765 = vsub.s32 7, %v764
      %v766 = vrot.slane %v419, %v765
      %775 = vmatprep.subr.mxu0 %v412
      %776 = vmatpush1.msra.mxu0 %v411
      %777 = vmatprep.subr.mxu0 %v404
      %778 = vmatpush1.msra.mxu0 %v403
      %779 = vmatprep.subr.mxu0 %v396
      %780 = vmatpush1.msra.mxu0 %v395
      %781 = vmatprep.subr.mxu0 %v388
      %782 = vmatpush1.msra.mxu0 %v387
      %783 = vmatprep.subr.mxu0 %v380
      %784 = vmatpush1.msra.mxu0 %v379
      %785 = vmatprep.subr.mxu0 %v372
      %786 = vmatpush1.msra.mxu0 %v371
      %787 = vmatprep.subr.mxu0 %v364
      %788 = vmatpush1.msra.mxu0 %v363
      %789 = vmatprep.subr.mxu0 %v356
      %790 = vmatpush1.msra.mxu0 %v355
      %791 = vmatprep.subr.mxu0 %v348
      %792 = vmatpush1.msra.mxu0 %v347
      %793 = vmatprep.subr.mxu0 %v340
      %794 = vmatpush1.msra.mxu0 %v339
      %795 = vmatprep.subr.mxu0 %v332
      %796 = vmatpush1.msra.mxu0 %v331
      %797 = vmatprep.subr.mxu0 %v324
      %798 = vmatpush1.msra.mxu0 %v323
      %799 = vmatprep.subr.mxu0 %v316
      %800 = vmatpush1.msra.mxu0 %v315
      %801 = vmatprep.subr.mxu0 %v308
      %802 = vmatpush1.msra.mxu0 %v307
      %803 = vmatprep.subr.mxu0 %v300
      %804 = vmatpush1.msra.mxu0 %v299
      %805 = vmatprep.subr.mxu0 %v292
      %806 = vmatpush1.msra.mxu0 %v291
      %807 = vmatprep.subr.mxu0 0.0
      %808 = vmatpush2.msra.mxu0 0.0
      %809 = vmatprep.subr.mxu0 0.0
      %810 = vmatpush2.msra.mxu0 0.0
      %811 = vmatprep.subr.mxu0 0.0
      %812 = vmatpush2.msra.mxu0 0.0
      %813 = vmatprep.subr.mxu0 0.0
      %814 = vmatpush2.msra.mxu0 0.0
      %815 = vmatprep.subr.mxu0 0.0
      %816 = vmatpush2.msra.mxu0 0.0
      %817 = vmatprep.subr.mxu0 0.0
      %818 = vmatpush2.msra.mxu0 0.0
      %819 = vmatprep.subr.mxu0 0.0
      %820 = vmatpush2.msra.mxu0 0.0
      %821 = vmatprep.subr.mxu0 0.0
      %822 = vmatpush2.msra.mxu0 0.0
      %823 = vmatprep.subr.mxu0 0.0
      %824 = vmatpush2.msra.mxu0 0.0
      %825 = vmatprep.subr.mxu0 0.0
      %826 = vmatpush2.msra.mxu0 0.0
      %827 = vmatprep.subr.mxu0 0.0
      %828 = vmatpush2.msra.mxu0 0.0
      %829 = vmatprep.subr.mxu0 0.0
      %830 = vmatpush2.msra.mxu0 0.0
      %831 = vmatprep.subr.mxu0 0.0
      %832 = vmatpush2.msra.mxu0 0.0
      %833 = vmatprep.subr.mxu0 0.0
      %834 = vmatpush2.msra.mxu0 0.0
      %835 = vmatprep.subr.mxu0 0.0
      %836 = vmatpush2.msra.mxu0 0.0
      %837 = vmatprep.subr.mxu0 0.0
      %838 = vmatpush2.msra.mxu0 0.0
      %839 = vmatprep.mubr.f32.mxu0 0.0
      %840 = vmatmul.mubr.f32.gmra.mxu0 %v733
      %v841 = vpop.f32.mrf.mxu0
      %v842 = vadd.f32 %v738, %v841
      %v843 = vpop.f32.mrf.mxu0
      %v844 = vadd.f32 %v742, %v843
      %845 = vdwg.mxu0
      %846 = vmatprep.subr.mxu0 %v414
      %847 = vmatpush1.msra.mxu0 %v413
      %848 = vmatprep.subr.mxu0 %v406
      %849 = vmatpush1.msra.mxu0 %v405
      %850 = vmatprep.subr.mxu0 %v398
      %851 = vmatpush1.msra.mxu0 %v397
      %852 = vmatprep.subr.mxu0 %v390
      %853 = vmatpush1.msra.mxu0 %v389
      %854 = vmatprep.subr.mxu0 %v382
      %855 = vmatpush1.msra.mxu0 %v381
      %856 = vmatprep.subr.mxu0 %v374
      %857 = vmatpush1.msra.mxu0 %v373
      %858 = vmatprep.subr.mxu0 %v366
      %859 = vmatpush1.msra.mxu0 %v365
      %860 = vmatprep.subr.mxu0 %v358
      %861 = vmatpush1.msra.mxu0 %v357
      %862 = vmatprep.subr.mxu0 %v350
      %863 = vmatpush1.msra.mxu0 %v349
      %864 = vmatprep.subr.mxu0 %v342
      %865 = vmatpush1.msra.mxu0 %v341
      %866 = vmatprep.subr.mxu0 %v334
      %867 = vmatpush1.msra.mxu0 %v333
      %868 = vmatprep.subr.mxu0 %v326
      %869 = vmatpush1.msra.mxu0 %v325
      %870 = vmatprep.subr.mxu0 %v318
      %871 = vmatpush1.msra.mxu0 %v317
      %872 = vmatprep.subr.mxu0 %v310
      %873 = vmatpush1.msra.mxu0 %v309
      %874 = vmatprep.subr.mxu0 %v302
      %875 = vmatpush1.msra.mxu0 %v301
      %876 = vmatprep.subr.mxu0 %v294
      %877 = vmatpush1.msra.mxu0 %v293
      %878 = vmatprep.subr.mxu0 0.0
      %879 = vmatpush2.msra.mxu0 0.0
      %880 = vmatprep.subr.mxu0 0.0
      %881 = vmatpush2.msra.mxu0 0.0
      %882 = vmatprep.subr.mxu0 0.0
      %883 = vmatpush2.msra.mxu0 0.0
      %884 = vmatprep.subr.mxu0 0.0
      %885 = vmatpush2.msra.mxu0 0.0
      %886 = vmatprep.subr.mxu0 0.0
      %887 = vmatpush2.msra.mxu0 0.0
      %888 = vmatprep.subr.mxu0 0.0
      %889 = vmatpush2.msra.mxu0 0.0
      %890 = vmatprep.subr.mxu0 0.0
      %891 = vmatpush2.msra.mxu0 0.0
      %892 = vmatprep.subr.mxu0 0.0
      %893 = vmatpush2.msra.mxu0 0.0
      %894 = vmatprep.subr.mxu0 0.0
      %895 = vmatpush2.msra.mxu0 0.0
      %896 = vmatprep.subr.mxu0 0.0
      %897 = vmatpush2.msra.mxu0 0.0
      %898 = vmatprep.subr.mxu0 0.0
      %899 = vmatpush2.msra.mxu0 0.0
      %900 = vmatprep.subr.mxu0 0.0
      %901 = vmatpush2.msra.mxu0 0.0
      %902 = vmatprep.subr.mxu0 0.0
      %903 = vmatpush2.msra.mxu0 0.0
      %904 = vmatprep.subr.mxu0 0.0
      %905 = vmatpush2.msra.mxu0 0.0
      %906 = vmatprep.subr.mxu0 0.0
      %907 = vmatpush2.msra.mxu0 0.0
      %908 = vmatprep.subr.mxu0 0.0
      %909 = vmatpush2.msra.mxu0 0.0
      %910 = vmatprep.mubr.f32.mxu0 0.0
      %911 = vmatmul.mubr.f32.gmra.mxu0 %v733
      %v912 = vpop.f32.mrf.mxu0
      %v913 = vadd.f32 %v746, %v912
      %v914 = vpop.f32.mrf.mxu0
      %v915 = vadd.f32 %v750, %v914
      %916 = vdwg.mxu0
      %917 = vmatprep.subr.mxu0 %v416
      %918 = vmatpush1.msra.mxu0 %v415
      %919 = vmatprep.subr.mxu0 %v408
      %920 = vmatpush1.msra.mxu0 %v407
      %921 = vmatprep.subr.mxu0 %v400
      %922 = vmatpush1.msra.mxu0 %v399
      %923 = vmatprep.subr.mxu0 %v392
      %924 = vmatpush1.msra.mxu0 %v391
      %925 = vmatprep.subr.mxu0 %v384
      %926 = vmatpush1.msra.mxu0 %v383
      %927 = vmatprep.subr.mxu0 %v376
      %928 = vmatpush1.msra.mxu0 %v375
      %929 = vmatprep.subr.mxu0 %v368
      %930 = vmatpush1.msra.mxu0 %v367
      %931 = vmatprep.subr.mxu0 %v360
      %932 = vmatpush1.msra.mxu0 %v359
      %933 = vmatprep.subr.mxu0 %v352
      %934 = vmatpush1.msra.mxu0 %v351
      %935 = vmatprep.subr.mxu0 %v344
      %936 = vmatpush1.msra.mxu0 %v343
      %937 = vmatprep.subr.mxu0 %v336
      %938 = vmatpush1.msra.mxu0 %v335
      %939 = vmatprep.subr.mxu0 %v328
      %940 = vmatpush1.msra.mxu0 %v327
      %941 = vmatprep.subr.mxu0 %v320
      %942 = vmatpush1.msra.mxu0 %v319
      %943 = vmatprep.subr.mxu0 %v312
      %944 = vmatpush1.msra.mxu0 %v311
      %945 = vmatprep.subr.mxu0 %v304
      %946 = vmatpush1.msra.mxu0 %v303
      %947 = vmatprep.subr.mxu0 %v296
      %948 = vmatpush1.msra.mxu0 %v295
      %949 = vmatprep.subr.mxu0 0.0
      %950 = vmatpush2.msra.mxu0 0.0
      %951 = vmatprep.subr.mxu0 0.0
      %952 = vmatpush2.msra.mxu0 0.0
      %953 = vmatprep.subr.mxu0 0.0
      %954 = vmatpush2.msra.mxu0 0.0
      %955 = vmatprep.subr.mxu0 0.0
      %956 = vmatpush2.msra.mxu0 0.0
      %957 = vmatprep.subr.mxu0 0.0
      %958 = vmatpush2.msra.mxu0 0.0
      %959 = vmatprep.subr.mxu0 0.0
      %960 = vmatpush2.msra.mxu0 0.0
      %961 = vmatprep.subr.mxu0 0.0
      %962 = vmatpush2.msra.mxu0 0.0
      %963 = vmatprep.subr.mxu0 0.0
      %964 = vmatpush2.msra.mxu0 0.0
      %965 = vmatprep.subr.mxu0 0.0
      %966 = vmatpush2.msra.mxu0 0.0
      %967 = vmatprep.subr.mxu0 0.0
      %968 = vmatpush2.msra.mxu0 0.0
      %969 = vmatprep.subr.mxu0 0.0
      %970 = vmatpush2.msra.mxu0 0.0
      %971 = vmatprep.subr.mxu0 0.0
      %972 = vmatpush2.msra.mxu0 0.0
      %973 = vmatprep.subr.mxu0 0.0
      %974 = vmatpush2.msra.mxu0 0.0
      %975 = vmatprep.subr.mxu0 0.0
      %976 = vmatpush2.msra.mxu0 0.0
      %977 = vmatprep.subr.mxu0 0.0
      %978 = vmatpush2.msra.mxu0 0.0
      %979 = vmatprep.subr.mxu0 0.0
      %980 = vmatpush2.msra.mxu0 0.0
      %981 = vmatprep.mubr.f32.mxu0 0.0
      %982 = vmatmul.mubr.f32.gmra.mxu0 %v733
      %v983 = vpop.f32.mrf.mxu0
      %v984 = vadd.f32 %v754, %v983
      %v985 = vpop.f32.mrf.mxu0
      %v986 = vadd.f32 %v758, %v985
      %987 = vdwg.mxu0
      %988 = vmatprep.subr.mxu0 %v418
      %989 = vmatpush1.msra.mxu0 %v417
      %990 = vmatprep.subr.mxu0 %v410
      %991 = vmatpush1.msra.mxu0 %v409
      %992 = vmatprep.subr.mxu0 %v402
      %993 = vmatpush1.msra.mxu0 %v401
      %994 = vmatprep.subr.mxu0 %v394
      %995 = vmatpush1.msra.mxu0 %v393
      %996 = vmatprep.subr.mxu0 %v386
      %997 = vmatpush1.msra.mxu0 %v385
      %998 = vmatprep.subr.mxu0 %v378
      %999 = vmatpush1.msra.mxu0 %v377
      %1000 = vmatprep.subr.mxu0 %v370
      %1001 = vmatpush1.msra.mxu0 %v369
      %1002 = vmatprep.subr.mxu0 %v362
      %1003 = vmatpush1.msra.mxu0 %v361
      %1004 = vmatprep.subr.mxu0 %v354
      %1005 = vmatpush1.msra.mxu0 %v353
      %1006 = vmatprep.subr.mxu0 %v346
      %1007 = vmatpush1.msra.mxu0 %v345
      %1008 = vmatprep.subr.mxu0 %v338
      %1009 = vmatpush1.msra.mxu0 %v337
      %1010 = vmatprep.subr.mxu0 %v330
      %1011 = vmatpush1.msra.mxu0 %v329
      %1012 = vmatprep.subr.mxu0 %v322
      %1013 = vmatpush1.msra.mxu0 %v321
      %1014 = vmatprep.subr.mxu0 %v314
      %1015 = vmatpush1.msra.mxu0 %v313
      %1016 = vmatprep.subr.mxu0 %v306
      %1017 = vmatpush1.msra.mxu0 %v305
      %1018 = vmatprep.subr.mxu0 %v298
      %1019 = vmatpush1.msra.mxu0 %v297
      %1020 = vmatprep.subr.mxu0 0.0
      %1021 = vmatpush2.msra.mxu0 0.0
      %1022 = vmatprep.subr.mxu0 0.0
      %1023 = vmatpush2.msra.mxu0 0.0
      %1024 = vmatprep.subr.mxu0 0.0
      %1025 = vmatpush2.msra.mxu0 0.0
      %1026 = vmatprep.subr.mxu0 0.0
      %1027 = vmatpush2.msra.mxu0 0.0
      %1028 = vmatprep.subr.mxu0 0.0
      %1029 = vmatpush2.msra.mxu0 0.0
      %1030 = vmatprep.subr.mxu0 0.0
      %1031 = vmatpush2.msra.mxu0 0.0
      %1032 = vmatprep.subr.mxu0 0.0
      %1033 = vmatpush2.msra.mxu0 0.0
      %1034 = vmatprep.subr.mxu0 0.0
      %1035 = vmatpush2.msra.mxu0 0.0
      %1036 = vmatprep.subr.mxu0 0.0
      %1037 = vmatpush2.msra.mxu0 0.0
      %1038 = vmatprep.subr.mxu0 0.0
      %1039 = vmatpush2.msra.mxu0 0.0
      %1040 = vmatprep.subr.mxu0 0.0
      %1041 = vmatpush2.msra.mxu0 0.0
      %1042 = vmatprep.subr.mxu0 0.0
      %1043 = vmatpush2.msra.mxu0 0.0
      %1044 = vmatprep.subr.mxu0 0.0
      %1045 = vmatpush2.msra.mxu0 0.0
      %1046 = vmatprep.subr.mxu0 0.0
      %1047 = vmatpush2.msra.mxu0 0.0
      %1048 = vmatprep.subr.mxu0 0.0
      %1049 = vmatpush2.msra.mxu0 0.0
      %1050 = vmatprep.subr.mxu0 0.0
      %1051 = vmatpush2.msra.mxu0 0.0
      %1052 = vmatprep.mubr.f32.mxu0 0.0
      %1053 = vmatmul.mubr.f32.gmra.mxu0 %v733
      %v1054 = vpop.f32.mrf.mxu0
      %v1055 = vadd.f32 %v762, %v1054
      %v1056 = vpop.f32.mrf.mxu0
      %v1057 = vadd.f32 %v766, %v1056
      %1058 = vdwg.mxu0
      %v1059 = vstv %s442
      %v1060 = vmul.f32 %v1059, %v434
      %v1061 = vmul.f32 %v1059, %v435
      %v1062 = vmul.f32 %v1059, %v436
      %v1063 = vmul.f32 %v1059, %v437
      %v1064 = vmul.f32 %v1059, %v438
      %v1065 = vmul.f32 %v1059, %v439
      %v1066 = vmul.f32 %v1059, %v440
      %v1067 = vmul.f32 %v1059, %v441
      %v1068 = vstv %s443
      %v1069 = vmul.f32 %v1068, %v842
      %v1070 = vmul.f32 %v1068, %v844
      %v1071 = vmul.f32 %v1068, %v913
      %v1072 = vmul.f32 %v1068, %v915
      %v1073 = vmul.f32 %v1068, %v984
      %v1074 = vmul.f32 %v1068, %v986
      %v1075 = vmul.f32 %v1068, %v1055
      %v1076 = vmul.f32 %v1068, %v1057
      %v1077 = vsub.f32 %v1060, %v1069
      %v1078 = vsub.f32 %v1061, %v1070
      %v1079 = vsub.f32 %v1062, %v1071
      %v1080 = vsub.f32 %v1063, %v1072
      %v1081 = vsub.f32 %v1064, %v1073
      %v1082 = vsub.f32 %v1065, %v1074
      %v1083 = vsub.f32 %v1066, %v1075
      %v1084 = vsub.f32 %v1067, %v1076
      %s1085 = smul.u32 %s429, 8
      %s1086 = smul.addr %s1085, 8
      %s1087 = scalar_lea.vmem [#allocation16], %s1086
      %v1088 = vld [vmem:[%s1087] sm:$0xff]
      %v1089 = vld [vmem:[%s1087 + $0x8] sm:$0xff]
      %v1090 = vld [vmem:[%s1087 + $0x10] sm:$0xff]
      %v1091 = vld [vmem:[%s1087 + $0x18] sm:$0xff]
      %v1092 = vld [vmem:[%s1087 + $0x20] sm:$0xff]
      %v1093 = vld [vmem:[%s1087 + $0x28] sm:$0xff]
      %v1094 = vld [vmem:[%s1087 + $0x30] sm:$0xff]
      %v1095 = vld [vmem:[%s1087 + $0x38] sm:$0xff]
      %v1096 = vstv %s444
      %v1097 = vmul.f32 %v1096, %v1088
      %v1098 = vmul.f32 %v1096, %v1089
      %v1099 = vmul.f32 %v1096, %v1090
      %v1100 = vmul.f32 %v1096, %v1091
      %v1101 = vmul.f32 %v1096, %v1092
      %v1102 = vmul.f32 %v1096, %v1093
      %v1103 = vmul.f32 %v1096, %v1094
      %v1104 = vmul.f32 %v1096, %v1095
      %v1105 = vadd.f32 %v1077, %v1097
      %v1106 = vadd.f32 %v1078, %v1098
      %v1107 = vadd.f32 %v1079, %v1099
      %v1108 = vadd.f32 %v1080, %v1100
      %v1109 = vadd.f32 %v1081, %v1101
      %v1110 = vadd.f32 %v1082, %v1102
      %v1111 = vadd.f32 %v1083, %v1103
      %v1112 = vadd.f32 %v1084, %v1104
      %s1113 = sld [smem:[#allocation10 + %s429]]
      %p1114 = scmp.eq.s32.totalorder %s1113, 1
      // Predicated region
      $region93: #{tpu_custom_call.1} parent=89 // pred_check
        %p1115 = pneg %p1114
      $region94: #{tpu_custom_call.1} parent=89 // pred_check_branch
        %1117 = sbr.rel (%p1115) target = $region96
      $region95: #{tpu_custom_call.1} parent=89 // pred_region
        %v1118 = vmax.f32 %v1105, -1.0
        %v1119 = vmax.f32 %v1106, -1.0
        %v1120 = vmax.f32 %v1107, -1.0
        %v1121 = vmax.f32 %v1108, -1.0
        %v1122 = vmax.f32 %v1109, -1.0
        %v1123 = vmax.f32 %v1110, -1.0
        %v1124 = vmax.f32 %v1111, -1.0
        %v1125 = vmax.f32 %v1112, -1.0
        %v1126 = vmin.f32 %v1118, 1.0
        %v1127 = vmin.f32 %v1119, 1.0
        %v1128 = vmin.f32 %v1120, 1.0
        %v1129 = vmin.f32 %v1121, 1.0
        %v1130 = vmin.f32 %v1122, 1.0
        %v1131 = vmin.f32 %v1123, 1.0
        %v1132 = vmin.f32 %v1124, 1.0
        %v1133 = vmin.f32 %v1125, 1.0
        %s1134 = sld [smem:[#allocation11 + %s429]]
        %s1135 = smul.u32 %s1134, 8
        %s1136 = smul.addr %s1135, 8
        %s1137 = scalar_lea.vmem [#allocation20], %s1136
        %1138 = vst [vmem:[%s1137] sm:$0xff] %v1126
        %1139 = vst [vmem:[%s1137 + $0x8] sm:$0xff] %v1127
        %1140 = vst [vmem:[%s1137 + $0x10] sm:$0xff] %v1128
        %1141 = vst [vmem:[%s1137 + $0x18] sm:$0xff] %v1129
        %1142 = vst [vmem:[%s1137 + $0x20] sm:$0xff] %v1130
        %1143 = vst [vmem:[%s1137 + $0x28] sm:$0xff] %v1131
        %1144 = vst [vmem:[%s1137 + $0x30] sm:$0xff] %v1132
        %1145 = vst [vmem:[%s1137 + $0x38] sm:$0xff] %v1133
      $region96: #{tpu_custom_call.1} parent=89 // pred_fallthru
        _
    $region90: #{tpu_custom_call.1} parent=1 // loop_footer
      %s433 = sadd.s32 1, %s429
    $region91: #{tpu_custom_call.1} parent=1 // loop_footer_branch
      %428 = sbr.rel target = $region87
    $region92: #{tpu_custom_call.1} parent=1 // loop_exit
      _
    // Predicated region
    $region97: #{tpu_custom_call.1} parent=1 // pred_check
      _
    $region98: #{tpu_custom_call.1} parent=1 // pred_check_branch
      %1147 = sbr.rel (0) target = $region100
    $region99: #{tpu_custom_call.1} parent=1 // pred_region
      %s1149 = ssub.s32 2048, 2048
      %1150 = vsyncadd [#allocation4], %s1149
      %s1151 = sshll.u32 [#allocation20], 4
      %s1152 = int_to_ptr.vmem [resolvable:$true] %s1151
      %1157 = dma.vmem_to_hbm [thread:$0]  %s1152, 2048, %s11, [#allocation4], 1024, 1024, 64
    $region100: #{tpu_custom_call.1} parent=1 // pred_fallthru
      _
    // Predicated region
    $region101: #{tpu_custom_call.1} parent=1 // pred_check
      _
    $region102: #{tpu_custom_call.1} parent=1 // pred_check_branch
      %1159 = sbr.rel (0) target = $region104
    $region103: #{tpu_custom_call.1} parent=1 // pred_region
      %1160 = dma.done [#allocation4], 2048
    $region104: #{tpu_custom_call.1} parent=1 // pred_fallthru
      _
    %1161 = vsyncpa [#allocation3], 1
    %1162 = vsyncpa [#allocation15], 1
    %1163 = vsyncpa [#allocation18], 1
    %1164 = vsyncpa [#allocation4], 1
    %1165 = vsyncpa [#allocation5], 1
    %1166 = vsyncpa [#allocation6], 1
    %1167 = vsyncpa [#allocation9], 1
    %1168 = vsyncpa [#allocation12], 1

</llo_original>
